<compile_context>
chip_gen: v6e
topology: v6e:2x2x1
jax: 0.10.0
libtpu: 0.0.40
codegen_flags: <defaults>
</compile_context>

<pallas_src>
import functools

import jax
import jax.numpy as jnp
from jax.experimental import pallas as pl
from jax.experimental.pallas import tpu as pltpu

_BN_EPS = 1e-5


def _round_up(a, b):
    return (a + b - 1) // b * b


def _sublane_multiple(dtype):
    # f32 -> 8, bf16 -> 16, int8/fp8 -> 32 (sub-32-bit dtypes pack along sublanes).
    return max(8, 32 // jnp.dtype(dtype).itemsize)


def _vmem_policy():
    """Returns (per-x-block budget bytes, vmem_limit_bytes, force >=2 grid steps)."""
    kind = ""
    try:
        kind = jax.devices()[0].device_kind.lower()
    except Exception:
        pass
    if "v7" in kind:          # 64 MiB physical VMEM, 2 TensorCores/chip
        return 6 << 20, 48 << 20, True
    if "v6" in kind:          # 128 MiB VMEM: big tiles amortize per-step overhead
        return 12 << 20, 96 << 20, False
    if "v5" in kind:          # v5e scoped default is only 16 MiB; raise it, keep blocks small
        return 3 << 20, 64 << 20, False
    return 3 << 20, 32 << 20, False   # unknown: conservative


# --------------------------------------------------------------------------
# Kernels
# --------------------------------------------------------------------------
def _bn_residual_fused_kernel(x_ref, gamma_ref, beta_ref, o_ref, *, inv_m):
    """Full (N, TC, HW) block resident: stats + fused affine + residual."""
    tc = x_ref.shape[1]

    # Stats phase: f32 accumulation straight off the VMEM input buffer
    # (transient temps only — no block-sized f32 value kept live into the
    # apply phase).
    s = jnp.sum(jnp.sum(x_ref[...].astype(jnp.float32), axis=2, keepdims=True),
                axis=0, keepdims=True)                                   # (1, tc, 1)
    ss = jnp.sum(jnp.sum(jnp.square(x_ref[...].astype(jnp.float32)), axis=2,
                         keepdims=True), axis=0, keepdims=True)          # (1, tc, 1)
    mean = s * inv_m
    var = jnp.maximum(ss * inv_m - mean * mean, 0.0)   # one-pass var can cancel slightly negative
    inv_std = jax.lax.rsqrt(var + _BN_EPS)

    gamma = gamma_ref[...].reshape(1, tc, 1)
    beta = beta_ref[...].reshape(1, tc, 1)
    scale = 1.0 + gamma * inv_std                      # batch_norm2(x) + x  ==  scale*x + shift
    shift = beta - gamma * mean * inv_std

    # Apply phase: re-read x_ref (already VMEM-resident; vld slots have headroom).
    o_ref[...] = (x_ref[...].astype(jnp.float32) * scale + shift).astype(o_ref.dtype)


def _bn_stats_kernel(x_ref, s_ref, ss_ref):
    """Accumulate per-channel sum / sumsq over the 'arbitrary' HW grid axis."""
    @pl.when(pl.program_id(1) == 0)
    def _():
        s_ref[...] = jnp.zeros_like(s_ref)
        ss_ref[...] = jnp.zeros_like(ss_ref)

    ps = jnp.sum(jnp.sum(x_ref[...].astype(jnp.float32), axis=2, keepdims=True),
                 axis=0)                                                  # (tc, 1)
    pss = jnp.sum(jnp.sum(jnp.square(x_ref[...].astype(jnp.float32)), axis=2,
                          keepdims=True), axis=0)                         # (tc, 1)
    s_ref[...] += ps
    ss_ref[...] += pss


def _bn_apply_kernel(x_ref, scale_ref, shift_ref, o_ref):
    tc = x_ref.shape[1]
    scale = scale_ref[...].reshape(1, tc, 1)
    shift = shift_ref[...].reshape(1, tc, 1)
    o_ref[...] = (x_ref[...].astype(jnp.float32) * scale + shift).astype(o_ref.dtype)


# --------------------------------------------------------------------------
# Wrapper
# --------------------------------------------------------------------------
def gen_residual_block(x_nchw, gamma, beta, *, donate_x=False, _block_budget_bytes=None):
    """x_nchw: (N, C, H, W).  gamma, beta: (C,) BatchNorm2d affine params.

    Set donate_x=True only when the caller donates x (aliases input 0 to the
    output and avoids a full-tensor allocation)."""
    n, c, h, w = x_nchw.shape
    hw = h * w
    dtype = x_nchw.dtype
    itemsize = jnp.dtype(dtype).itemsize

    budget, vmem_limit, force_multi_step = _vmem_policy()
    if _block_budget_bytes is not None:     # test hook / manual override
        budget = _block_budget_bytes
    sub = _sublane_multiple(dtype)

    # Channel granularity / padding (sublane-packing aware).
    if c % sub == 0:
        g, c_pad = sub, c
    elif c % 8 == 0:
        g, c_pad = 8, c                      # legal; minor packing waste for sub-32-bit dtypes
    else:
        g, c_pad = sub, _round_up(c, sub)    # pad awkward C: restores a multi-step, pipelined grid

    x3 = x_nchw.reshape(n, c, hw)            # free reshape — no transpose pass
    if c_pad != c:
        x3 = jnp.pad(x3, ((0, 0), (0, c_pad - c), (0, 0)))   # zero channels -> harmless stats
    gamma_c = jnp.zeros((c_pad, 1), jnp.float32).at[:c, 0].set(gamma.astype(jnp.float32))
    beta_c = jnp.zeros((c_pad, 1), jnp.float32).at[:c, 0].set(beta.astype(jnp.float32))

    per_channel_bytes = n * hw * itemsize
    alias = {0: 0} if donate_x else {}

    if g * per_channel_bytes <= budget:
        # ---------------- fused single-pass path ----------------
        max_tc = (budget // per_channel_bytes) // g * g
        tc = min(c_pad, max(g, max_tc))
        while c_pad % tc != 0:               # exact grid (no padded stat blocks)
            tc -= g
        if force_multi_step and c_pad // tc < 2 and c_pad >= 2 * g:
            tc = (c_pad // 2) // g * g       # v7x: >=2 grid steps so both TCs are engaged
            while c_pad % tc != 0:
                tc -= g

        cost = pl.CostEstimate(
            flops=5 * n * c_pad * hw,        # sum, sum(x^2), scale*x+shift
            transcendentals=c_pad,           # rsqrt per channel
            bytes_accessed=2 * n * c_pad * hw * itemsize,
        )
        out3 = pl.pallas_call(
            functools.partial(_bn_residual_fused_kernel, inv_m=1.0 / float(n * hw)),
            out_shape=jax.ShapeDtypeStruct((n, c_pad, hw), dtype),
            grid=(c_pad // tc,),
            in_specs=[
                pl.BlockSpec((n, tc, hw), lambda i: (0, i, 0)),   # x
                pl.BlockSpec((tc, 1), lambda i: (i, 0)),          # gamma
                pl.BlockSpec((tc, 1), lambda i: (i, 0)),          # beta
            ],
            out_specs=pl.BlockSpec((n, tc, hw), lambda i: (0, i, 0)),
            compiler_params=pltpu.CompilerParams(
                dimension_semantics=("parallel",),
                vmem_limit_bytes=vmem_limit,
            ),
            cost_estimate=cost,
            input_output_aliases=alias,
        )(x3, gamma_c, beta_c)
    else:
        # ---------------- large path: stats sweep + apply sweep ----------------
        tc = g
        # Lane tile: multiple of 128, sized so one (n, tc, thw) block fits the budget.
        thw = min(_round_up(hw, 128),
                  max(128, (budget // (n * tc * itemsize)) // 128 * 128))
        # TODO(synk): if even an (n, g, 128) block exceeds the budget (enormous N),
        # add a batch grid axis as well.
        hw_pad = _round_up(hw, thw)
        if hw_pad != hw:
            x3 = jnp.pad(x3, ((0, 0), (0, 0), (0, hw_pad - hw)))   # zeros: don't perturb sums

        grid2 = (c_pad // tc, hw_pad // thw)
        s, ss = pl.pallas_call(
            _bn_stats_kernel,
            out_shape=(jax.ShapeDtypeStruct((c_pad, 1), jnp.float32),
                       jax.ShapeDtypeStruct((c_pad, 1), jnp.float32)),
            grid=grid2,
            in_specs=[pl.BlockSpec((n, tc, thw), lambda i, j: (0, i, j))],
            out_specs=(pl.BlockSpec((tc, 1), lambda i, j: (i, 0)),
                       pl.BlockSpec((tc, 1), lambda i, j: (i, 0))),
            compiler_params=pltpu.CompilerParams(
                dimension_semantics=("parallel", "arbitrary"),
                vmem_limit_bytes=vmem_limit,
            ),
        )(x3)

        # Tiny host-side finalize on (C,1) arrays.
        m = float(n * hw)                     # true element count (padding is zeros)
        mean = s / m
        var = jnp.maximum(ss / m - mean * mean, 0.0)
        inv_std = jax.lax.rsqrt(var + _BN_EPS)
        scale = 1.0 + gamma_c * inv_std
        shift = beta_c - gamma_c * mean * inv_std

        out3 = pl.pallas_call(
            _bn_apply_kernel,
            out_shape=jax.ShapeDtypeStruct((n, c_pad, hw_pad), dtype),
            grid=grid2,
            in_specs=[
                pl.BlockSpec((n, tc, thw), lambda i, j: (0, i, j)),
                pl.BlockSpec((tc, 1), lambda i, j: (i, 0)),
                pl.BlockSpec((tc, 1), lambda i, j: (i, 0)),
            ],
            out_specs=pl.BlockSpec((n, tc, thw), lambda i, j: (0, i, j)),
            compiler_params=pltpu.CompilerParams(
                dimension_semantics=("parallel", "parallel"),
                vmem_limit_bytes=vmem_limit,
            ),
            input_output_aliases=alias,
        )(x3, scale, shift)

    if out3.shape[1] != c or out3.shape[2] != hw:
        out3 = out3[:, :c, :hw]
    return out3.reshape(n, c, h, w)


if __name__ == "__main__":
    key = jax.random.PRNGKey(0)
    k_x, k_g, k_b = jax.random.split(key, 3)

    N, C, H, W = 2, 4, 16, 16
    x = jax.random.normal(k_x, (N, C, H, W), dtype=jnp.float32)

    # BatchNorm2d(channels=C) affine params.  (conv1 / bn1 / prelu / conv2 are
    # dead code in the reference forward() and are intentionally not computed.)
    gamma = 1.0 + 0.1 * jax.random.normal(k_g, (C,), dtype=jnp.float32)
    beta = 0.1 * jax.random.normal(k_b, (C,), dtype=jnp.float32)

    # Fast fused path.
    out = jax.block_until_ready(gen_residual_block(x, gamma, beta))
    # Force the large (stats + apply) path with a tiny block budget to verify it too.
    out2 = jax.block_until_ready(
        gen_residual_block(x, gamma, beta, _block_budget_bytes=8 * 1024))

    # Pure-JAX reference: training-mode BatchNorm2d over (N,H,W) + residual.
    mean = jnp.mean(x, axis=(0, 2, 3), keepdims=True)
    var = jnp.mean((x - mean) ** 2, axis=(0, 2, 3), keepdims=True)
    ref = (x - mean) / jnp.sqrt(var + _BN_EPS)
    ref = ref * gamma.reshape(1, C, 1, 1) + beta.reshape(1, C, 1, 1) + x

    assert out.shape == (N, C, H, W)
    assert jnp.allclose(out, ref, atol=1e-5, rtol=1e-5), "fused path mismatch vs reference"
    assert jnp.allclose(out2, ref, atol=1e-5, rtol=1e-5), "two-pass path mismatch vs reference"
    print("KERNEL_OK")
</pallas_src>

<mosaic_0001>
module attributes {stable_mosaic.version = 11 : i64} {
  func.func @_bn_residual_fused_kernel(%arg0: i32, %arg1: memref<2x8x256xf32, #tpu.memory_space<vmem>>, %arg2: memref<8x1xf32, #tpu.memory_space<vmem>>, %arg3: memref<8x1xf32, #tpu.memory_space<vmem>>, %arg4: memref<2x8x256xf32, #tpu.memory_space<vmem>>) attributes {dimension_semantics = [#tpu.dimension_semantics<parallel>], iteration_bounds = array<i64: 1>, scalar_prefetch = 0 : i64, scratch_operands = 0 : i64, tpu.core_type = #tpu.core_type<tc>, window_params = [{transform_indices = @transform_0, window_bounds = array<i64: 2, 8, 256>}, {transform_indices = @transform_1, window_bounds = array<i64: 8, 1>}, {transform_indices = @transform_2, window_bounds = array<i64: 8, 1>}, {transform_indices = @transform_3, window_bounds = array<i64: 2, 8, 256>}]} {
    %c0 = arith.constant 0 : index
    %c0_0 = arith.constant 0 : index
    %c0_1 = arith.constant 0 : index
    %0 = vector.load %arg1[%c0, %c0_0, %c0_1] : memref<2x8x256xf32, #tpu.memory_space<vmem>>, vector<2x8x256xf32>
    %cst = arith.constant dense<0.000000e+00> : vector<2x8xf32>
    %1 = vector.multi_reduction <add>, %0, %cst [2] : vector<2x8x256xf32> to vector<2x8xf32>
    %2 = vector.shape_cast %1 : vector<2x8xf32> to vector<2x8x1xf32>
    %cst_2 = arith.constant dense<0.000000e+00> : vector<8x1xf32>
    %3 = vector.multi_reduction <add>, %2, %cst_2 [0] : vector<2x8x1xf32> to vector<8x1xf32>
    %4 = vector.shape_cast %3 : vector<8x1xf32> to vector<1x8x1xf32>
    %c0_3 = arith.constant 0 : index
    %c0_4 = arith.constant 0 : index
    %c0_5 = arith.constant 0 : index
    %5 = vector.load %arg1[%c0_3, %c0_4, %c0_5] : memref<2x8x256xf32, #tpu.memory_space<vmem>>, vector<2x8x256xf32>
    %6 = arith.mulf %5, %5 : vector<2x8x256xf32>
    %cst_6 = arith.constant dense<0.000000e+00> : vector<2x8xf32>
    %7 = vector.multi_reduction <add>, %6, %cst_6 [2] : vector<2x8x256xf32> to vector<2x8xf32>
    %8 = vector.shape_cast %7 : vector<2x8xf32> to vector<2x8x1xf32>
    %cst_7 = arith.constant dense<0.000000e+00> : vector<8x1xf32>
    %9 = vector.multi_reduction <add>, %8, %cst_7 [0] : vector<2x8x1xf32> to vector<8x1xf32>
    %10 = vector.shape_cast %9 : vector<8x1xf32> to vector<1x8x1xf32>
    %cst_8 = arith.constant 0.001953125 : f32
    %11 = vector.broadcast %cst_8 : f32 to vector<1x8x1xf32>
    %12 = arith.mulf %4, %11 : vector<1x8x1xf32>
    %cst_9 = arith.constant 0.001953125 : f32
    %13 = vector.broadcast %cst_9 : f32 to vector<1x8x1xf32>
    %14 = arith.mulf %10, %13 : vector<1x8x1xf32>
    %15 = arith.mulf %12, %12 : vector<1x8x1xf32>
    %16 = arith.subf %14, %15 : vector<1x8x1xf32>
    %cst_10 = arith.constant 0.000000e+00 : f32
    %17 = vector.broadcast %cst_10 : f32 to vector<1x8x1xf32>
    %18 = arith.maximumf %16, %17 : vector<1x8x1xf32>
    %cst_11 = arith.constant 9.99999974E-6 : f32
    %19 = vector.broadcast %cst_11 : f32 to vector<1x8x1xf32>
    %20 = arith.addf %18, %19 : vector<1x8x1xf32>
    %21 = math.rsqrt %20 : vector<1x8x1xf32>
    %c0_12 = arith.constant 0 : index
    %c0_13 = arith.constant 0 : index
    %22 = vector.load %arg2[%c0_12, %c0_13] : memref<8x1xf32, #tpu.memory_space<vmem>>, vector<8x1xf32>
    %23 = vector.shape_cast %22 : vector<8x1xf32> to vector<1x8x1xf32>
    %c0_14 = arith.constant 0 : index
    %c0_15 = arith.constant 0 : index
    %24 = vector.load %arg3[%c0_14, %c0_15] : memref<8x1xf32, #tpu.memory_space<vmem>>, vector<8x1xf32>
    %25 = vector.shape_cast %24 : vector<8x1xf32> to vector<1x8x1xf32>
    %26 = arith.mulf %23, %21 : vector<1x8x1xf32>
    %cst_16 = arith.constant 1.000000e+00 : f32
    %27 = vector.broadcast %cst_16 : f32 to vector<1x8x1xf32>
    %28 = arith.addf %27, %26 : vector<1x8x1xf32>
    %29 = arith.mulf %23, %12 : vector<1x8x1xf32>
    %30 = arith.mulf %29, %21 : vector<1x8x1xf32>
    %31 = arith.subf %25, %30 : vector<1x8x1xf32>
    %c0_17 = arith.constant 0 : index
    %c0_18 = arith.constant 0 : index
    %c0_19 = arith.constant 0 : index
    %32 = vector.load %arg1[%c0_17, %c0_18, %c0_19] : memref<2x8x256xf32, #tpu.memory_space<vmem>>, vector<2x8x256xf32>
    %33 = vector.broadcast %28 : vector<1x8x1xf32> to vector<2x8x256xf32>
    %34 = arith.mulf %32, %33 : vector<2x8x256xf32>
    %35 = vector.broadcast %31 : vector<1x8x1xf32> to vector<2x8x256xf32>
    %36 = arith.addf %34, %35 : vector<2x8x256xf32>
    %c0_20 = arith.constant 0 : index
    %c0_21 = arith.constant 0 : index
    %c0_22 = arith.constant 0 : index
    %37 = vector.load %arg4[%c0_20, %c0_21, %c0_22] : memref<2x8x256xf32, #tpu.memory_space<vmem>>, vector<2x8x256xf32>
    tpu.vector_store %arg4[%c0_20, %c0_21, %c0_22], %36 {strides = array<i32>} : memref<2x8x256xf32, #tpu.memory_space<vmem>>, vector<2x8x256xf32>,
    return
  }
  func.func @transform_0(%arg0: i32) -> (i32, i32, i32) {
    %c0_i32 = arith.constant 0 : i32
    %c0_i32_0 = arith.constant 0 : i32
    %c0_i32_1 = arith.constant 0 : i32
    return %c0_i32, %arg0, %c0_i32_0 : i32, i32, i32
  }
  func.func @transform_1(%arg0: i32) -> (i32, i32) {
    %c0_i32 = arith.constant 0 : i32
    %c0_i32_0 = arith.constant 0 : i32
    return %arg0, %c0_i32 : i32, i32
  }
  func.func @transform_2(%arg0: i32) -> (i32, i32) {
    %c0_i32 = arith.constant 0 : i32
    %c0_i32_0 = arith.constant 0 : i32
    return %arg0, %c0_i32 : i32, i32
  }
  func.func @transform_3(%arg0: i32) -> (i32, i32, i32) {
    %c0_i32 = arith.constant 0 : i32
    %c0_i32_0 = arith.constant 0 : i32
    %c0_i32_1 = arith.constant 0 : i32
    return %c0_i32, %arg0, %c0_i32_0 : i32, i32, i32
  }
}

</mosaic_0001>

<llo_original>
// kernel: tpu_custom_call.1
$region0: #{tpu_custom_call.1}
  #allocation0 [shape = 'u32[]', space=smem, size = 0x4, offset = 0x4, fixed_abs, tag = 'smem constant byte address 0x4 - core index']
  #allocation1 [shape = 'u32[144,128]{1,0:T(1,128)}', space=vmem, size = 0x12000, scoped, tag = 'internal scratch']
  %s0 = inlined_call_operand.hbm [shape: f32[2,8,256], index: 0, kind: input, shape index: {}]
  %s1 = inlined_call_operand.vmem [shape: f32[8,1], index: 1, kind: input, shape index: {}]
  %s2 = inlined_call_operand.vmem [shape: f32[8,1], index: 2, kind: input, shape index: {}]
  %s3 = inlined_call_operand.hbm [shape: f32[2,8,256], index: 3, kind: output, shape index: {}]
  %s4 = sld [smem:[#allocation0]]
  $region26: #{tpu_custom_call.1} parent=0
    _
  %s6 = ssub.s32 1, %s4
  %s7 = scalar_select 0, %s6, %s4
  $region1: #{tpu_custom_call.1} parent=0
    #allocation2 [shape = 'u8[16384]{0}', space=vmem, size = 0x4000, scoped, tag = 'input window, operand 0, single buffered']
    #allocation3 [shape = 's32[1]{0}', space=sflag, size = 0x4, scoped, tag = 'scoped memory for tpu_custom_call.1']
    #allocation4 [shape = 's32[1]{0}', space=sflag, size = 0x4, scoped, tag = 'scoped memory for tpu_custom_call.1']
    #allocation5 [shape = 'u8[16384]{0}', space=vmem, size = 0x4000, scoped, tag = 'output window, operand 0, single buffered']
    %8 = vsyncpa [#allocation3], 0
    %9 = vsyncpa [#allocation4], 0
    // Predicated region
    $region2: #{tpu_custom_call.1} parent=1 // pred_check
      _
    $region3: #{tpu_custom_call.1} parent=1 // pred_check_branch
      %11 = sbr.rel (0) target = $region5
    $region4: #{tpu_custom_call.1} parent=1 // pred_region
      %s13 = ssub.s32 512, 512
      %14 = vsyncadd [#allocation3], %s13
      %s15 = sshll.u32 [#allocation2], 4
      %s16 = int_to_ptr.vmem [resolvable:$true] %s15
      %21 = dma.hbm_to_vmem [thread:$0]  %s0, 512, %s16, [#allocation3], 256, 256, 16
    $region5: #{tpu_custom_call.1} parent=1 // pred_fallthru
      _
    // Predicated region
    $region6: #{tpu_custom_call.1} parent=1 // pred_check
      _
    $region7: #{tpu_custom_call.1} parent=1 // pred_check_branch
      %23 = sbr.rel (0) target = $region9
    $region8: #{tpu_custom_call.1} parent=1 // pred_region
      _
    $region9: #{tpu_custom_call.1} parent=1 // pred_fallthru
      _
    // Predicated region
    $region10: #{tpu_custom_call.1} parent=1 // pred_check
      _
    $region11: #{tpu_custom_call.1} parent=1 // pred_check_branch
      %25 = sbr.rel (0) target = $region13
    $region12: #{tpu_custom_call.1} parent=1 // pred_region
      _
    $region13: #{tpu_custom_call.1} parent=1 // pred_fallthru
      _
    // Predicated region
    $region14: #{tpu_custom_call.1} parent=1 // pred_check
      _
    $region15: #{tpu_custom_call.1} parent=1 // pred_check_branch
      %27 = sbr.rel (0) target = $region17
    $region16: #{tpu_custom_call.1} parent=1 // pred_region
      %28 = dma.done [#allocation3], 512
    $region17: #{tpu_custom_call.1} parent=1 // pred_fallthru
      _
    %v29 = vld [vmem:[#allocation2] sm:$0xff]
    %v30 = vld [vmem:[#allocation2 + $0x8] sm:$0xff]
    %v31 = vld [vmem:[#allocation2 + $0x10] sm:$0xff]
    %v32 = vld [vmem:[#allocation2 + $0x18] sm:$0xff]
    %v33 = vadd.f32 %v29, %v30
    %34 = vadd.xlane.f32.xlu0 %v33
    %v35 = vpop.xlane.xlu0 %34
    %v36 = vadd.f32 %v31, %v32
    %37 = vadd.xlane.f32.xlu0 %v36
    %v38 = vpop.xlane.xlu0 %37
    %v39 = vadd.f32 %v35, %v38
    %v40 = vmul.f32 %v29, %v29
    %v41 = vmul.f32 %v30, %v30
    %v42 = vmul.f32 %v31, %v31
    %v43 = vmul.f32 %v32, %v32
    %v44 = vadd.f32 %v40, %v41
    %45 = vadd.xlane.f32.xlu0 %v44
    %v46 = vpop.xlane.xlu0 %45
    %v47 = vadd.f32 %v42, %v43
    %48 = vadd.xlane.f32.xlu0 %v47
    %v49 = vpop.xlane.xlu0 %48
    %v50 = vadd.f32 %v46, %v49
    %v51 = vmul.f32 %v39, 0.001953125
    %v52 = vmul.f32 %v50, 0.001953125
    %v53 = vmul.f32 %v51, %v51
    %v54 = vsub.f32 %v52, %v53
    %v55 = vmax.f32 %v54, 0.0
    %v56 = vadd.f32 %v55, 1e-05
    %v57 = vrsqrt.pop %v56
    %v58 = vld [vmem:[%s1] sm:$0xff]
    %v59 = vld [vmem:[%s2] sm:$0xff]
    %v60 = vmul.f32 %v58, %v57
    %v61 = vadd.f32 %v60, 1.0
    %v62 = vmul.f32 %v58, %v51
    %v63 = vmul.f32 %v62, %v57
    %v64 = vsub.f32 %v59, %v63
    %66 = vset.pattern.permute.xlu0 0
    %67 = vperm.xlu0 %66, %v61
    %v68 = vpop.permute.xlu0 %67
    %v70 = vmul.f32 %v29, %v68
    %v71 = vmul.f32 %v30, %v68
    %v72 = vmul.f32 %v31, %v68
    %v73 = vmul.f32 %v32, %v68
    %75 = vset.pattern.permute.xlu0 0
    %76 = vperm.xlu0 %75, %v64
    %v77 = vpop.permute.xlu0 %76
    %v79 = vadd.f32 %v70, %v77
    %v80 = vadd.f32 %v71, %v77
    %v81 = vadd.f32 %v72, %v77
    %v82 = vadd.f32 %v73, %v77
    %83 = vst [vmem:[#allocation5] sm:$0xff] %v79
    %84 = vst [vmem:[#allocation5 + $0x8] sm:$0xff] %v80
    %85 = vst [vmem:[#allocation5 + $0x10] sm:$0xff] %v81
    %86 = vst [vmem:[#allocation5 + $0x18] sm:$0xff] %v82
    // Predicated region
    $region18: #{tpu_custom_call.1} parent=1 // pred_check
      _
    $region19: #{tpu_custom_call.1} parent=1 // pred_check_branch
      %88 = sbr.rel (0) target = $region21
    $region20: #{tpu_custom_call.1} parent=1 // pred_region
      %s90 = ssub.s32 512, 512
      %91 = vsyncadd [#allocation4], %s90
      %s92 = sshll.u32 [#allocation5], 4
      %s93 = int_to_ptr.vmem [resolvable:$true] %s92
      %98 = dma.vmem_to_hbm [thread:$0]  %s93, 512, %s3, [#allocation4], 256, 256, 16
    $region21: #{tpu_custom_call.1} parent=1 // pred_fallthru
      _
    // Predicated region
    $region22: #{tpu_custom_call.1} parent=1 // pred_check
      _
    $region23: #{tpu_custom_call.1} parent=1 // pred_check_branch
      %100 = sbr.rel (0) target = $region25
    $region24: #{tpu_custom_call.1} parent=1 // pred_region
      %101 = dma.done [#allocation4], 512
    $region25: #{tpu_custom_call.1} parent=1 // pred_fallthru
      _
    %102 = vsyncpa [#allocation3], 1
    %103 = vsyncpa [#allocation4], 1

</llo_original>
